<compile_context>
chip_gen: v6e
topology: v6e:2x2x1
jax: 0.10.0
libtpu: 0.0.40
codegen_flags: <defaults>
</compile_context>

<pallas_src>
import functools
from collections import Counter

import numpy as np
import jax
import jax.numpy as jnp
from jax.experimental import pallas as pl
from jax.experimental.pallas import tpu as pltpu


def _dws_weights_kernel(xl_ref, xrt_ref, ncol_ref, nrow_ref, lcol_ref, lrow_ref,
                        w_ref, *, n_dims, n_valid, d2_min, nz2, eps):
    # xl_ref : (TM, D)  bf16   row tile of embeddings (anchors i)
    # xrt_ref: (D, Np)  bf16   full x^T (candidates j), resident across the grid
    # ncol/nrow: squared norms as (TM,1)/(1,Np) f32
    # lcol/lrow: labels as (TM,1)/(1,Np) int32
    # w_ref  : (TM, Np) bf16   sampling weights output

    # Gram tile on the MXU, bf16 operands, f32 accumulation.
    prod = jnp.dot(xl_ref[...], xrt_ref[...],
                   preferred_element_type=jnp.float32)            # (TM, Np)

    # Squared pairwise distance, with pdist eps and cutoff folded into one clamp:
    # max(sqrt(max(res, pdist_eps)), cutoff)  ==  sqrt(max(res, max(pdist_eps, cutoff^2)))
    res = jnp.maximum(ncol_ref[...] + nrow_ref[...] - 2.0 * prod, 0.0)
    d2 = jnp.maximum(res, d2_min)                                  # clamped d^2

    same = lcol_ref[...] == lrow_ref[...]                          # pos_and_self mask
    zero_loss = d2 >= nz2                                          # d >= nonzero_cutoff
    ignore = jnp.logical_or(same, zero_loss)

    n_pad = w_ref.shape[1]
    if n_valid < n_pad:                                            # static (trace-time)
        col = jax.lax.broadcasted_iota(jnp.int32, (1, n_pad), 1)
        ignore = jnp.logical_or(ignore, col >= n_valid)            # padded cols -> ignore

    # inverse pairwise-distance probability in log space (sqrt folded into 0.5*log(d^2));
    # clamp the second log argument so no -inf/NaN is ever produced (those entries are
    # always in the ignore set anyway).
    log_arg = jnp.maximum(1.0 - 0.25 * d2, 1e-20)
    inv_log_q = ((0.5 * (2.0 - n_dims)) * jnp.log(d2)
                 - (0.5 * (n_dims - 3.0)) * jnp.log(log_arg))
    inv_log_q = jnp.where(ignore, 0.0, inv_log_q)

    # Row max is complete per tile (columns are not tiled), so no cross-tile reduction.
    row_max = jnp.max(inv_log_q, axis=1, keepdims=True)
    w = jnp.exp(inv_log_q - row_max) + 1e-9
    w = jnp.where(same, 0.0, w)                                    # masked_fill_(pos_and_self, 0)
    w = jnp.where(d2 > nz2, eps, w)                                # masked_fill_(d > cutoff, eps)
    w_ref[...] = w.astype(w_ref.dtype)


def distance_weighted_kernel(x, labels, *, cutoff=0.5, nonzero_loss_cutoff_dist=1.4,
                             eps=1e-6, pdist_eps=1e-4, row_block=128):
    """Pallas kernel wrapper: returns the (N, N) float32 sampling-weight matrix."""
    n, d = x.shape
    tm = row_block
    n_pad = ((n + tm - 1) // tm) * tm                              # lane-dense (mult of 128)

    x_bf = x.astype(jnp.bfloat16)
    lab = labels.astype(jnp.int32)
    if n_pad != n:
        x_bf = jnp.pad(x_bf, ((0, n_pad - n), (0, 0)))
        lab = jnp.pad(lab, (0, n_pad - n), constant_values=-1)

    norms = jnp.sum(jnp.square(x_bf.astype(jnp.float32)), axis=1)  # consistent with bf16 matmul
    norm_col = norms.reshape(n_pad, 1)
    norm_row = norms.reshape(1, n_pad)
    lab_col = lab.reshape(n_pad, 1)
    lab_row = lab.reshape(1, n_pad)
    x_rt = x_bf.T                                                  # (D, Np) RHS for the MXU

    kern = functools.partial(
        _dws_weights_kernel,
        n_dims=float(d),
        n_valid=n,
        d2_min=float(max(pdist_eps, cutoff * cutoff)),
        nz2=float(nonzero_loss_cutoff_dist * nonzero_loss_cutoff_dist),
        eps=float(eps))

    w_pad = pl.pallas_call(
        kern,
        out_shape=jax.ShapeDtypeStruct((n_pad, n_pad), jnp.bfloat16),
        grid_spec=pltpu.PrefetchScalarGridSpec(
            num_scalar_prefetch=0,
            grid=(n_pad // tm,),
            in_specs=[
                pl.BlockSpec((tm, d), lambda i: (i, 0)),           # row tile of x
                pl.BlockSpec((d, n_pad), lambda i: (0, 0)),        # full x^T (resident)
                pl.BlockSpec((tm, 1), lambda i: (i, 0)),           # norms, column tile
                pl.BlockSpec((1, n_pad), lambda i: (0, 0)),        # norms, row
                pl.BlockSpec((tm, 1), lambda i: (i, 0)),           # labels, column tile
                pl.BlockSpec((1, n_pad), lambda i: (0, 0)),        # labels, row
            ],
            out_specs=pl.BlockSpec((tm, n_pad), lambda i: (i, 0)),
        ),
        compiler_params=pltpu.CompilerParams(
            dimension_semantics=("parallel",),                     # 2 TCs on v7x
            vmem_limit_bytes=48 * 1024 * 1024,                     # < 64 MiB physical on v7x
        ),
    )(x_bf, x_rt, norm_col, norm_row, lab_col, lab_row)

    # Slice away padding and hand a plain f32 matrix to the host-side sampler.
    return w_pad[:n, :n].astype(jnp.float32)


def distance_weighted_sampler_forward(x, labels, *, cutoff=0.5,
                                      nonzero_loss_cutoff_dist=1.4, eps=1e-6,
                                      seed=0):
    """Full forward: (a_indices, x[a], x[p], x[n]).  Sampling is done host-side."""
    weights = distance_weighted_kernel(
        x, labels, cutoff=cutoff,
        nonzero_loss_cutoff_dist=nonzero_loss_cutoff_dist, eps=eps)
    weights = jax.block_until_ready(weights)

    labels_np = np.asarray(labels)
    n = x.shape[0]
    w_np = np.asarray(weights, dtype=np.float64)

    # pos is a pure function of labels -> recomputed host-side (saves an N^2 kernel output).
    same_np = (labels_np[:, None] == labels_np[None, :]).astype(np.float64)
    pos_np = same_np - np.eye(n)

    num_neg = int(pos_np.sum() / n + 0.5)
    num_neg = max(1, num_neg)
    class_counter = Counter(labels_np.tolist())
    max_class_size = class_counter.most_common(1)[0][1]
    num_neg = min(num_neg, n - max_class_size)
    assert 1 <= num_neg <= n - max_class_size

    # TODO(synk): torch.multinomial (sampling w/o replacement from data-dependent weights)
    # and the per-anchor index assembly loop have no clean Pallas equivalent; done
    # host-side with a seeded numpy RNG.
    rng = np.random.RandomState(seed)
    neg = np.zeros_like(pos_np)
    for i in range(n):
        p = w_np[i] / w_np[i].sum()
        idx = rng.choice(n, size=num_neg, replace=False, p=p)
        neg[i, idx] = 1.0

    a_indices, p_indices, n_indices = [], [], []
    for i in range(n):
        if pos_np[i].sum() < 1:
            continue
        cur_posits = np.atleast_1d(np.nonzero(pos_np[i])[0])
        cur_negs = np.atleast_1d(np.nonzero(neg[i])[0])
        if len(cur_negs) != len(cur_posits):
            if len(cur_posits) < len(cur_negs):
                cur_posits = rng.choice(cur_posits, size=len(cur_negs))
            else:
                cur_posits = rng.choice(cur_posits, size=len(cur_negs), replace=False)
        p_indices.extend(cur_posits.tolist())
        n_indices.extend(cur_negs.tolist())
        a_indices.extend([i] * len(cur_posits))

    assert len(a_indices) == len(p_indices) == len(n_indices)
    assert len(a_indices)

    a_idx = jnp.asarray(a_indices, dtype=jnp.int32)
    p_idx = jnp.asarray(p_indices, dtype=jnp.int32)
    n_idx = jnp.asarray(n_indices, dtype=jnp.int32)
    return (a_indices,
            jnp.take(x, a_idx, axis=0),
            jnp.take(x, p_idx, axis=0),
            jnp.take(x, n_idx, axis=0))


if __name__ == "__main__":
    key = jax.random.PRNGKey(0)
    N, D, BATCH_K = 16, 32, 4                      # 4 classes x 4 samples, embed_dim=32
    x = jax.random.normal(key, (N, D), dtype=jnp.float32)
    x = x / jnp.linalg.norm(x, axis=1, keepdims=True)   # embeddings on the unit sphere
    labels = jnp.repeat(jnp.arange(N // BATCH_K, dtype=jnp.int32), BATCH_K)

    a_indices, xa, xp, xn = distance_weighted_sampler_forward(x, labels)
    jax.block_until_ready((xa, xp, xn))

    assert xa.shape == xp.shape == xn.shape == (len(a_indices), D)
    assert jnp.isfinite(xa).all() and jnp.isfinite(xp).all() and jnp.isfinite(xn).all()
    print("KERNEL_OK")
</pallas_src>

<mosaic_0001>
module attributes {stable_mosaic.version = 11 : i64} {
  func.func @_dws_weights_kernel(%arg0: i32, %arg1: memref<128x32xbf16, #tpu.memory_space<vmem>>, %arg2: memref<32x128xbf16, #tpu.memory_space<vmem>>, %arg3: memref<128x1xf32, #tpu.memory_space<vmem>>, %arg4: memref<1x128xf32, #tpu.memory_space<vmem>>, %arg5: memref<128x1xi32, #tpu.memory_space<vmem>>, %arg6: memref<1x128xi32, #tpu.memory_space<vmem>>, %arg7: memref<128x128xbf16, #tpu.memory_space<vmem>>) attributes {dimension_semantics = [#tpu.dimension_semantics<parallel>], iteration_bounds = array<i64: 1>, scalar_prefetch = 0 : i64, scratch_operands = 0 : i64, tpu.core_type = #tpu.core_type<tc>, window_params = [{transform_indices = @transform_0, window_bounds = array<i64: 128, 32>}, {pipeline_mode = #tpu.pipeline_mode<synchronous>, transform_indices = @transform_1, window_bounds = array<i64: 32, 128>}, {transform_indices = @transform_2, window_bounds = array<i64: 128, 1>}, {pipeline_mode = #tpu.pipeline_mode<synchronous>, transform_indices = @transform_3, window_bounds = array<i64: 1, 128>}, {transform_indices = @transform_4, window_bounds = array<i64: 128, 1>}, {pipeline_mode = #tpu.pipeline_mode<synchronous>, transform_indices = @transform_5, window_bounds = array<i64: 1, 128>}, {transform_indices = @transform_6, window_bounds = array<i64: 128, 128>}]} {
    %c0 = arith.constant 0 : index
    %c0_0 = arith.constant 0 : index
    %0 = vector.load %arg1[%c0, %c0_0] : memref<128x32xbf16, #tpu.memory_space<vmem>>, vector<128x32xbf16>
    %c0_1 = arith.constant 0 : index
    %c0_2 = arith.constant 0 : index
    %1 = vector.load %arg2[%c0_1, %c0_2] : memref<32x128xbf16, #tpu.memory_space<vmem>>, vector<32x128xbf16>
    %cst = arith.constant dense<0.000000e+00> : vector<128x128xf32>
    %2 = tpu.matmul %0, %1, %cst {dimension_numbers = #tpu.dot_dimension_numbers<[1], [0], [0], [1], [0, 0, 1, 1], [], []>} : vector<128x32xbf16>, vector<32x128xbf16>, vector<128x128xf32> -> vector<128x128xf32>
    %c0_3 = arith.constant 0 : index
    %c0_4 = arith.constant 0 : index
    %3 = vector.load %arg3[%c0_3, %c0_4] : memref<128x1xf32, #tpu.memory_space<vmem>>, vector<128x1xf32>
    %c0_5 = arith.constant 0 : index
    %c0_6 = arith.constant 0 : index
    %4 = vector.load %arg4[%c0_5, %c0_6] : memref<1x128xf32, #tpu.memory_space<vmem>>, vector<1x128xf32>
    %5 = vector.broadcast %3 : vector<128x1xf32> to vector<128x128xf32>
    %6 = vector.broadcast %4 : vector<1x128xf32> to vector<128x128xf32>
    %7 = arith.addf %5, %6 : vector<128x128xf32>
    %cst_7 = arith.constant 2.000000e+00 : f32
    %8 = vector.broadcast %cst_7 : f32 to vector<128x128xf32>
    %9 = arith.mulf %8, %2 : vector<128x128xf32>
    %10 = arith.subf %7, %9 : vector<128x128xf32>
    %cst_8 = arith.constant 0.000000e+00 : f32
    %11 = vector.broadcast %cst_8 : f32 to vector<128x128xf32>
    %12 = arith.maximumf %10, %11 : vector<128x128xf32>
    %cst_9 = arith.constant 2.500000e-01 : f32
    %13 = vector.broadcast %cst_9 : f32 to vector<128x128xf32>
    %14 = arith.maximumf %12, %13 : vector<128x128xf32>
    %c0_10 = arith.constant 0 : index
    %c0_11 = arith.constant 0 : index
    %15 = vector.load %arg5[%c0_10, %c0_11] : memref<128x1xi32, #tpu.memory_space<vmem>>, vector<128x1xi32>
    %c0_12 = arith.constant 0 : index
    %c0_13 = arith.constant 0 : index
    %16 = vector.load %arg6[%c0_12, %c0_13] : memref<1x128xi32, #tpu.memory_space<vmem>>, vector<1x128xi32>
    %17 = vector.broadcast %15 : vector<128x1xi32> to vector<128x128xi32>
    %18 = vector.broadcast %16 : vector<1x128xi32> to vector<128x128xi32>
    %19 = arith.cmpi eq, %17, %18 : vector<128x128xi32>
    %cst_14 = arith.constant 1.960000e+00 : f32
    %20 = vector.broadcast %cst_14 : f32 to vector<128x128xf32>
    %21 = arith.cmpf oge, %14, %20 : vector<128x128xf32>
    %22 = arith.ori %19, %21 : vector<128x128xi1>
    %23 = tpu.iota {dimensions = array<i32: 1>} : vector<1x128xi32>
    %c16_i32 = arith.constant 16 : i32
    %24 = vector.broadcast %c16_i32 : i32 to vector<1x128xi32>
    %25 = arith.cmpi sge, %23, %24 : vector<1x128xi32>
    %26 = vector.broadcast %25 : vector<1x128xi1> to vector<128x128xi1>
    %27 = arith.ori %22, %26 : vector<128x128xi1>
    %cst_15 = arith.constant 2.500000e-01 : f32
    %28 = vector.broadcast %cst_15 : f32 to vector<128x128xf32>
    %29 = arith.mulf %28, %14 : vector<128x128xf32>
    %cst_16 = arith.constant 1.000000e+00 : f32
    %30 = vector.broadcast %cst_16 : f32 to vector<128x128xf32>
    %31 = arith.subf %30, %29 : vector<128x128xf32>
    %cst_17 = arith.constant 9.99999968E-21 : f32
    %32 = vector.broadcast %cst_17 : f32 to vector<128x128xf32>
    %33 = arith.maximumf %31, %32 : vector<128x128xf32>
    %34 = math.log %14 : vector<128x128xf32>
    %cst_18 = arith.constant -1.500000e+01 : f32
    %35 = vector.broadcast %cst_18 : f32 to vector<128x128xf32>
    %36 = arith.mulf %35, %34 : vector<128x128xf32>
    %37 = math.log %33 : vector<128x128xf32>
    %cst_19 = arith.constant 1.450000e+01 : f32
    %38 = vector.broadcast %cst_19 : f32 to vector<128x128xf32>
    %39 = arith.mulf %38, %37 : vector<128x128xf32>
    %40 = arith.subf %36, %39 : vector<128x128xf32>
    %cst_20 = arith.constant 0.000000e+00 : f32
    %41 = vector.broadcast %cst_20 : f32 to vector<128x128xf32>
    %42 = arith.select %27, %41, %40 : vector<128x128xi1>, vector<128x128xf32>
    %cst_21 = arith.constant dense<0xFF800000> : vector<128xf32>
    %43 = vector.multi_reduction <maximumf>, %42, %cst_21 [1] : vector<128x128xf32> to vector<128xf32>
    %44 = vector.shape_cast %43 : vector<128xf32> to vector<128x1xf32>
    %45 = vector.broadcast %44 : vector<128x1xf32> to vector<128x128xf32>
    %46 = arith.subf %42, %45 : vector<128x128xf32>
    %47 = math.exp %46 : vector<128x128xf32>
    %cst_22 = arith.constant 9.99999971E-10 : f32
    %48 = vector.broadcast %cst_22 : f32 to vector<128x128xf32>
    %49 = arith.addf %47, %48 : vector<128x128xf32>
    %cst_23 = arith.constant 0.000000e+00 : f32
    %50 = vector.broadcast %cst_23 : f32 to vector<128x128xf32>
    %51 = arith.select %19, %50, %49 : vector<128x128xi1>, vector<128x128xf32>
    %cst_24 = arith.constant 1.960000e+00 : f32
    %52 = vector.broadcast %cst_24 : f32 to vector<128x128xf32>
    %53 = arith.cmpf ogt, %14, %52 : vector<128x128xf32>
    %cst_25 = arith.constant 9.99999997E-7 : f32
    %54 = vector.broadcast %cst_25 : f32 to vector<128x128xf32>
    %55 = arith.select %53, %54, %51 : vector<128x128xi1>, vector<128x128xf32>
    %56 = arith.truncf %55 : vector<128x128xf32> to vector<128x128xbf16>
    %c0_26 = arith.constant 0 : index
    %c0_27 = arith.constant 0 : index
    %57 = vector.load %arg7[%c0_26, %c0_27] : memref<128x128xbf16, #tpu.memory_space<vmem>>, vector<128x128xbf16>
    tpu.vector_store %arg7[%c0_26, %c0_27], %56 {strides = array<i32>} : memref<128x128xbf16, #tpu.memory_space<vmem>>, vector<128x128xbf16>,
    return
  }
  func.func @transform_0(%arg0: i32) -> (i32, i32) {
    %c0_i32 = arith.constant 0 : i32
    %c0_i32_0 = arith.constant 0 : i32
    return %arg0, %c0_i32 : i32, i32
  }
  func.func @transform_1(%arg0: i32) -> (i32, i32) {
    %c0_i32 = arith.constant 0 : i32
    %c0_i32_0 = arith.constant 0 : i32
    %c0_i32_1 = arith.constant 0 : i32
    return %c0_i32, %c0_i32_0 : i32, i32
  }
  func.func @transform_2(%arg0: i32) -> (i32, i32) {
    %c0_i32 = arith.constant 0 : i32
    %c0_i32_0 = arith.constant 0 : i32
    return %arg0, %c0_i32 : i32, i32
  }
  func.func @transform_3(%arg0: i32) -> (i32, i32) {
    %c0_i32 = arith.constant 0 : i32
    %c0_i32_0 = arith.constant 0 : i32
    %c0_i32_1 = arith.constant 0 : i32
    return %c0_i32, %c0_i32_0 : i32, i32
  }
  func.func @transform_4(%arg0: i32) -> (i32, i32) {
    %c0_i32 = arith.constant 0 : i32
    %c0_i32_0 = arith.constant 0 : i32
    return %arg0, %c0_i32 : i32, i32
  }
  func.func @transform_5(%arg0: i32) -> (i32, i32) {
    %c0_i32 = arith.constant 0 : i32
    %c0_i32_0 = arith.constant 0 : i32
    %c0_i32_1 = arith.constant 0 : i32
    return %c0_i32, %c0_i32_0 : i32, i32
  }
  func.func @transform_6(%arg0: i32) -> (i32, i32) {
    %c0_i32 = arith.constant 0 : i32
    %c0_i32_0 = arith.constant 0 : i32
    return %arg0, %c0_i32 : i32, i32
  }
}

</mosaic_0001>

<llo_original>
// kernel: tpu_custom_call.1
$region0: #{tpu_custom_call.1}
  #allocation0 [shape = 'u32[]', space=smem, size = 0x4, offset = 0x4, fixed_abs, tag = 'smem constant byte address 0x4 - core index']
  #allocation1 [shape = 'u32[144,128]{1,0:T(1,128)}', space=vmem, size = 0x12000, scoped, tag = 'internal scratch']
  %s0 = inlined_call_operand.vmem [shape: bf16[128,32], index: 0, kind: input, shape index: {}]
  %s1 = inlined_call_operand.vmem [shape: bf16[32,128], index: 1, kind: input, shape index: {}]
  %s2 = inlined_call_operand.vmem [shape: f32[128,1], index: 2, kind: input, shape index: {}]
  %s3 = inlined_call_operand.vmem [shape: f32[1,128], index: 3, kind: input, shape index: {}]
  %s4 = inlined_call_operand.vmem [shape: s32[128,1], index: 4, kind: input, shape index: {}]
  %s5 = inlined_call_operand.vmem [shape: s32[1,128], index: 5, kind: input, shape index: {}]
  %s6 = inlined_call_operand.hbm [shape: bf16[128,128], index: 6, kind: output, shape index: {}]
  %s7 = sld [smem:[#allocation0]]
  $region34: #{tpu_custom_call.1} parent=0
    _
  %s9 = ssub.s32 1, %s7
  %s10 = scalar_select 0, %s9, %s7
  $region1: #{tpu_custom_call.1} parent=0
    #allocation2 [shape = 'u8[32768]{0}', space=vmem, size = 0x8000, scoped, tag = 'output window, operand 0, single buffered']
    #allocation3 [shape = 's32[1]{0}', space=sflag, size = 0x4, scoped, tag = 'scoped memory for tpu_custom_call.1']
    %11 = vsyncpa [#allocation3], 0
    // Predicated region
    $region2: #{tpu_custom_call.1} parent=1 // pred_check
      _
    $region3: #{tpu_custom_call.1} parent=1 // pred_check_branch
      %13 = sbr.rel (0) target = $region5
    $region4: #{tpu_custom_call.1} parent=1 // pred_region
      _
    $region5: #{tpu_custom_call.1} parent=1 // pred_fallthru
      _
    // Predicated region
    $region6: #{tpu_custom_call.1} parent=1 // pred_check
      _
    $region7: #{tpu_custom_call.1} parent=1 // pred_check_branch
      %15 = sbr.rel (0) target = $region9
    $region8: #{tpu_custom_call.1} parent=1 // pred_region
      _
    $region9: #{tpu_custom_call.1} parent=1 // pred_fallthru
      _
    // Predicated region
    $region10: #{tpu_custom_call.1} parent=1 // pred_check
      _
    $region11: #{tpu_custom_call.1} parent=1 // pred_check_branch
      %17 = sbr.rel (0) target = $region13
    $region12: #{tpu_custom_call.1} parent=1 // pred_region
      _
    $region13: #{tpu_custom_call.1} parent=1 // pred_fallthru
      _
    // Predicated region
    $region14: #{tpu_custom_call.1} parent=1 // pred_check
      _
    $region15: #{tpu_custom_call.1} parent=1 // pred_check_branch
      %19 = sbr.rel (0) target = $region17
    $region16: #{tpu_custom_call.1} parent=1 // pred_region
      _
    $region17: #{tpu_custom_call.1} parent=1 // pred_fallthru
      _
    // Predicated region
    $region18: #{tpu_custom_call.1} parent=1 // pred_check
      _
    $region19: #{tpu_custom_call.1} parent=1 // pred_check_branch
      %21 = sbr.rel (0) target = $region21
    $region20: #{tpu_custom_call.1} parent=1 // pred_region
      _
    $region21: #{tpu_custom_call.1} parent=1 // pred_fallthru
      _
    // Predicated region
    $region22: #{tpu_custom_call.1} parent=1 // pred_check
      _
    $region23: #{tpu_custom_call.1} parent=1 // pred_check_branch
      %23 = sbr.rel (0) target = $region25
    $region24: #{tpu_custom_call.1} parent=1 // pred_region
      _
    $region25: #{tpu_custom_call.1} parent=1 // pred_fallthru
      _
    %v25 = vld [vmem:[%s0] sm:$0xf]
    %v26 = vld [vmem:[%s0 + $0x4] sm:$0xf]
    %v27 = vld [vmem:[%s0 + $0x8] sm:$0xf]
    %v28 = vld [vmem:[%s0 + $0xc] sm:$0xf]
    %v29 = vld [vmem:[%s0 + $0x10] sm:$0xf]
    %v30 = vld [vmem:[%s0 + $0x14] sm:$0xf]
    %v31 = vld [vmem:[%s0 + $0x18] sm:$0xf]
    %v32 = vld [vmem:[%s0 + $0x1c] sm:$0xf]
    %v33 = vld [vmem:[%s0 + $0x20] sm:$0xf]
    %v34 = vld [vmem:[%s0 + $0x24] sm:$0xf]
    %v35 = vld [vmem:[%s0 + $0x28] sm:$0xf]
    %v36 = vld [vmem:[%s0 + $0x2c] sm:$0xf]
    %v37 = vld [vmem:[%s0 + $0x30] sm:$0xf]
    %v38 = vld [vmem:[%s0 + $0x34] sm:$0xf]
    %v39 = vld [vmem:[%s0 + $0x38] sm:$0xf]
    %v40 = vld [vmem:[%s0 + $0x3c] sm:$0xf]
    %v41 = vld [vmem:[%s1] sm:$0xf]
    %v42 = vld [vmem:[%s1 + $0x4] sm:$0xf]
    %v43 = vld [vmem:[%s1 + $0x8] sm:$0xf]
    %v44 = vld [vmem:[%s1 + $0xc] sm:$0xf]
    %v61 = vunpack.c.l.b16 %v25
    %v62 = vunpack.c.l.b16 %v26
    %v63 = vunpack.c.l.b16 %v27
    %v64 = vunpack.c.l.b16 %v28
    %v65 = vunpack.c.l.b16 %v29
    %v66 = vunpack.c.l.b16 %v30
    %v67 = vunpack.c.l.b16 %v31
    %v68 = vunpack.c.l.b16 %v32
    %v69 = vunpack.c.l.b16 %v33
    %v70 = vunpack.c.l.b16 %v34
    %v71 = vunpack.c.l.b16 %v35
    %v72 = vunpack.c.l.b16 %v36
    %v73 = vunpack.c.l.b16 %v37
    %v74 = vunpack.c.l.b16 %v38
    %v75 = vunpack.c.l.b16 %v39
    %v76 = vunpack.c.l.b16 %v40
    %v77 = vpack.c.b16 %v62, %v61
    %v78 = vpack.c.b16 %v64, %v63
    %v79 = vpack.c.b16 %v66, %v65
    %v80 = vpack.c.b16 %v68, %v67
    %v81 = vpack.c.b16 %v70, %v69
    %v82 = vpack.c.b16 %v72, %v71
    %v83 = vpack.c.b16 %v74, %v73
    %v84 = vpack.c.b16 %v76, %v75
    %v89 = vunpack.c.l.b16 %v41
    %v90 = vunpack.c.l.b16 %v42
    %v91 = vunpack.c.l.b16 %v43
    %v92 = vunpack.c.l.b16 %v44
    %v93 = vpack.c.b16 %v90, %v89
    %v94 = vpack.c.b16 %v92, %v91
    %vm97 = vcmask 261120
    %v99 = vsel %vm97, %v77, 0
    %v102 = vsel %vm97, %v78, 0
    %v105 = vsel %vm97, %v79, 0
    %v108 = vsel %vm97, %v80, 0
    %v111 = vsel %vm97, %v81, 0
    %v114 = vsel %vm97, %v82, 0
    %v117 = vsel %vm97, %v83, 0
    %v120 = vsel %vm97, %v84, 0
    %122 = vmatprep.subr.bf16.mxu0 0
    %123 = vmatpush1.bf16.msra.mxu0 0
    %124 = vmatprep.subr.bf16.mxu0 0
    %125 = vmatpush1.bf16.msra.mxu0 0
    %126 = vmatprep.subr.bf16.mxu0 0
    %127 = vmatpush1.bf16.msra.mxu0 0
    %128 = vmatprep.subr.bf16.mxu0 0
    %129 = vmatpush1.bf16.msra.mxu0 0
    %130 = vmatprep.subr.bf16.mxu0 0
    %131 = vmatpush1.bf16.msra.mxu0 0
    %132 = vmatprep.subr.bf16.mxu0 0
    %133 = vmatpush1.bf16.msra.mxu0 0
    %134 = vmatprep.subr.bf16.mxu0 0
    %135 = vmatpush1.bf16.msra.mxu0 %v94
    %136 = vmatprep.subr.bf16.mxu0 0
    %137 = vmatpush1.bf16.msra.mxu0 %v93
    %138 = vmatprep.subr.bf16.mxu0 0
    %139 = vmatpush2.bf16.msra.mxu0 0
    %140 = vmatprep.subr.bf16.mxu0 0
    %141 = vmatpush2.bf16.msra.mxu0 0
    %142 = vmatprep.subr.bf16.mxu0 0
    %143 = vmatpush2.bf16.msra.mxu0 0
    %144 = vmatprep.subr.bf16.mxu0 0
    %145 = vmatpush2.bf16.msra.mxu0 0
    %146 = vmatprep.subr.bf16.mxu0 0
    %147 = vmatpush2.bf16.msra.mxu0 0
    %148 = vmatprep.subr.bf16.mxu0 0
    %149 = vmatpush2.bf16.msra.mxu0 0
    %150 = vmatprep.subr.bf16.mxu0 0
    %151 = vmatpush2.bf16.msra.mxu0 0
    %152 = vmatprep.subr.bf16.mxu0 0
    %153 = vmatpush2.bf16.msra.mxu0 0
    %154 = vmatprep.mubr.bf16.mxu0 0
    %155 = vmatmul.mubr.bf16.gmra.mxu0 %v99
    %v156 = vpop.f32.mrf.mxu0
    %v157 = vadd.f32 0.0, %v156
    %v158 = vpop.f32.mrf.mxu0
    %v159 = vpop.f32.mrf.mxu0
    %v160 = vadd.f32 0.0, %v159
    %v161 = vpop.f32.mrf.mxu0
    %162 = vmatprep.mubr.bf16.mxu0 0
    %163 = vmatmul.mubr.bf16.gmra.mxu0 %v102
    %v164 = vpop.f32.mrf.mxu0
    %v165 = vadd.f32 0.0, %v164
    %v166 = vpop.f32.mrf.mxu0
    %v167 = vpop.f32.mrf.mxu0
    %v168 = vadd.f32 0.0, %v167
    %v169 = vpop.f32.mrf.mxu0
    %170 = vmatprep.mubr.bf16.mxu0 0
    %171 = vmatmul.mubr.bf16.gmra.mxu0 %v105
    %v172 = vpop.f32.mrf.mxu0
    %v173 = vadd.f32 0.0, %v172
    %v174 = vpop.f32.mrf.mxu0
    %v175 = vpop.f32.mrf.mxu0
    %v176 = vadd.f32 0.0, %v175
    %v177 = vpop.f32.mrf.mxu0
    %178 = vmatprep.mubr.bf16.mxu0 0
    %179 = vmatmul.mubr.bf16.gmra.mxu0 %v108
    %v180 = vpop.f32.mrf.mxu0
    %v181 = vadd.f32 0.0, %v180
    %v182 = vpop.f32.mrf.mxu0
    %v183 = vpop.f32.mrf.mxu0
    %v184 = vadd.f32 0.0, %v183
    %v185 = vpop.f32.mrf.mxu0
    %186 = vmatprep.mubr.bf16.mxu0 0
    %187 = vmatmul.mubr.bf16.gmra.mxu0 %v111
    %v188 = vpop.f32.mrf.mxu0
    %v189 = vadd.f32 0.0, %v188
    %v190 = vpop.f32.mrf.mxu0
    %v191 = vpop.f32.mrf.mxu0
    %v192 = vadd.f32 0.0, %v191
    %v193 = vpop.f32.mrf.mxu0
    %194 = vmatprep.mubr.bf16.mxu0 0
    %195 = vmatmul.mubr.bf16.gmra.mxu0 %v114
    %v196 = vpop.f32.mrf.mxu0
    %v197 = vadd.f32 0.0, %v196
    %v198 = vpop.f32.mrf.mxu0
    %v199 = vpop.f32.mrf.mxu0
    %v200 = vadd.f32 0.0, %v199
    %v201 = vpop.f32.mrf.mxu0
    %202 = vmatprep.mubr.bf16.mxu0 0
    %203 = vmatmul.mubr.bf16.gmra.mxu0 %v117
    %v204 = vpop.f32.mrf.mxu0
    %v205 = vadd.f32 0.0, %v204
    %v206 = vpop.f32.mrf.mxu0
    %v207 = vpop.f32.mrf.mxu0
    %v208 = vadd.f32 0.0, %v207
    %v209 = vpop.f32.mrf.mxu0
    %210 = vmatprep.mubr.bf16.mxu0 0
    %211 = vmatmul.mubr.bf16.gmra.mxu0 %v120
    %v212 = vpop.f32.mrf.mxu0
    %v213 = vadd.f32 0.0, %v212
    %v214 = vpop.f32.mrf.mxu0
    %v215 = vpop.f32.mrf.mxu0
    %v216 = vadd.f32 0.0, %v215
    %v217 = vpop.f32.mrf.mxu0
    %218 = vdwg.mxu0
    %v219 = vld [vmem:[%s2] sm:$0xff]
    %v220 = vld [vmem:[%s2 + $0x8] sm:$0xff]
    %v221 = vld [vmem:[%s2 + $0x10] sm:$0xff]
    %v222 = vld [vmem:[%s2 + $0x18] sm:$0xff]
    %v223 = vld [vmem:[%s2 + $0x20] sm:$0xff]
    %v224 = vld [vmem:[%s2 + $0x28] sm:$0xff]
    %v225 = vld [vmem:[%s2 + $0x30] sm:$0xff]
    %v226 = vld [vmem:[%s2 + $0x38] sm:$0xff]
    %v227 = vld [vmem:[%s2 + $0x40] sm:$0xff]
    %v228 = vld [vmem:[%s2 + $0x48] sm:$0xff]
    %v229 = vld [vmem:[%s2 + $0x50] sm:$0xff]
    %v230 = vld [vmem:[%s2 + $0x58] sm:$0xff]
    %v231 = vld [vmem:[%s2 + $0x60] sm:$0xff]
    %v232 = vld [vmem:[%s2 + $0x68] sm:$0xff]
    %v233 = vld [vmem:[%s2 + $0x70] sm:$0xff]
    %v234 = vld [vmem:[%s2 + $0x78] sm:$0xff]
    %v235 = vld [vmem:[%s3] sm:$0x1]
    %237 = vset.pattern.permute.xlu0 0
    %238 = vperm.xlu0 %237, %v219
    %v239 = vpop.permute.xlu0 %238
    %242 = vset.pattern.permute.xlu0 0
    %243 = vperm.xlu0 %242, %v220
    %v244 = vpop.permute.xlu0 %243
    %247 = vset.pattern.permute.xlu0 0
    %248 = vperm.xlu0 %247, %v221
    %v249 = vpop.permute.xlu0 %248
    %252 = vset.pattern.permute.xlu0 0
    %253 = vperm.xlu0 %252, %v222
    %v254 = vpop.permute.xlu0 %253
    %257 = vset.pattern.permute.xlu0 0
    %258 = vperm.xlu0 %257, %v223
    %v259 = vpop.permute.xlu0 %258
    %262 = vset.pattern.permute.xlu0 0
    %263 = vperm.xlu0 %262, %v224
    %v264 = vpop.permute.xlu0 %263
    %267 = vset.pattern.permute.xlu0 0
    %268 = vperm.xlu0 %267, %v225
    %v269 = vpop.permute.xlu0 %268
    %272 = vset.pattern.permute.xlu0 0
    %273 = vperm.xlu0 %272, %v226
    %v274 = vpop.permute.xlu0 %273
    %277 = vset.pattern.permute.xlu0 0
    %278 = vperm.xlu0 %277, %v227
    %v279 = vpop.permute.xlu0 %278
    %282 = vset.pattern.permute.xlu0 0
    %283 = vperm.xlu0 %282, %v228
    %v284 = vpop.permute.xlu0 %283
    %287 = vset.pattern.permute.xlu0 0
    %288 = vperm.xlu0 %287, %v229
    %v289 = vpop.permute.xlu0 %288
    %292 = vset.pattern.permute.xlu0 0
    %293 = vperm.xlu0 %292, %v230
    %v294 = vpop.permute.xlu0 %293
    %297 = vset.pattern.permute.xlu0 0
    %298 = vperm.xlu0 %297, %v231
    %v299 = vpop.permute.xlu0 %298
    %302 = vset.pattern.permute.xlu0 0
    %303 = vperm.xlu0 %302, %v232
    %v304 = vpop.permute.xlu0 %303
    %307 = vset.pattern.permute.xlu0 0
    %308 = vperm.xlu0 %307, %v233
    %v309 = vpop.permute.xlu0 %308
    %312 = vset.pattern.permute.xlu0 0
    %313 = vperm.xlu0 %312, %v234
    %v314 = vpop.permute.xlu0 %313
    %v317 = vlaneseq
    %v318 = vshrl.u32 %v317, 7
    %v319 = vsub.s32 0, %v318
    %v320 = vrot.slane %v235, %v319
    %v322 = vadd.f32 %v239, %v320
    %v323 = vadd.f32 %v244, %v320
    %v324 = vadd.f32 %v249, %v320
    %v325 = vadd.f32 %v254, %v320
    %v326 = vadd.f32 %v259, %v320
    %v327 = vadd.f32 %v264, %v320
    %v328 = vadd.f32 %v269, %v320
    %v329 = vadd.f32 %v274, %v320
    %v330 = vadd.f32 %v279, %v320
    %v331 = vadd.f32 %v284, %v320
    %v332 = vadd.f32 %v289, %v320
    %v333 = vadd.f32 %v294, %v320
    %v334 = vadd.f32 %v299, %v320
    %v335 = vadd.f32 %v304, %v320
    %v336 = vadd.f32 %v309, %v320
    %v337 = vadd.f32 %v314, %v320
    %v338 = vmul.f32 %v157, 2.0
    %v339 = vmul.f32 %v160, 2.0
    %v340 = vmul.f32 %v165, 2.0
    %v341 = vmul.f32 %v168, 2.0
    %v342 = vmul.f32 %v173, 2.0
    %v343 = vmul.f32 %v176, 2.0
    %v344 = vmul.f32 %v181, 2.0
    %v345 = vmul.f32 %v184, 2.0
    %v346 = vmul.f32 %v189, 2.0
    %v347 = vmul.f32 %v192, 2.0
    %v348 = vmul.f32 %v197, 2.0
    %v349 = vmul.f32 %v200, 2.0
    %v350 = vmul.f32 %v205, 2.0
    %v351 = vmul.f32 %v208, 2.0
    %v352 = vmul.f32 %v213, 2.0
    %v353 = vmul.f32 %v216, 2.0
    %v354 = vsub.f32 %v322, %v338
    %v355 = vsub.f32 %v323, %v339
    %v356 = vsub.f32 %v324, %v340
    %v357 = vsub.f32 %v325, %v341
    %v358 = vsub.f32 %v326, %v342
    %v359 = vsub.f32 %v327, %v343
    %v360 = vsub.f32 %v328, %v344
    %v361 = vsub.f32 %v329, %v345
    %v362 = vsub.f32 %v330, %v346
    %v363 = vsub.f32 %v331, %v347
    %v364 = vsub.f32 %v332, %v348
    %v365 = vsub.f32 %v333, %v349
    %v366 = vsub.f32 %v334, %v350
    %v367 = vsub.f32 %v335, %v351
    %v368 = vsub.f32 %v336, %v352
    %v369 = vsub.f32 %v337, %v353
    %v370 = vmax.f32 %v354, 0.0
    %v371 = vmax.f32 %v355, 0.0
    %v372 = vmax.f32 %v356, 0.0
    %v373 = vmax.f32 %v357, 0.0
    %v374 = vmax.f32 %v358, 0.0
    %v375 = vmax.f32 %v359, 0.0
    %v376 = vmax.f32 %v360, 0.0
    %v377 = vmax.f32 %v361, 0.0
    %v378 = vmax.f32 %v362, 0.0
    %v379 = vmax.f32 %v363, 0.0
    %v380 = vmax.f32 %v364, 0.0
    %v381 = vmax.f32 %v365, 0.0
    %v382 = vmax.f32 %v366, 0.0
    %v383 = vmax.f32 %v367, 0.0
    %v384 = vmax.f32 %v368, 0.0
    %v385 = vmax.f32 %v369, 0.0
    %v386 = vmax.f32 %v370, 0.25
    %v387 = vmax.f32 %v371, 0.25
    %v388 = vmax.f32 %v372, 0.25
    %v389 = vmax.f32 %v373, 0.25
    %v390 = vmax.f32 %v374, 0.25
    %v391 = vmax.f32 %v375, 0.25
    %v392 = vmax.f32 %v376, 0.25
    %v393 = vmax.f32 %v377, 0.25
    %v394 = vmax.f32 %v378, 0.25
    %v395 = vmax.f32 %v379, 0.25
    %v396 = vmax.f32 %v380, 0.25
    %v397 = vmax.f32 %v381, 0.25
    %v398 = vmax.f32 %v382, 0.25
    %v399 = vmax.f32 %v383, 0.25
    %v400 = vmax.f32 %v384, 0.25
    %v401 = vmax.f32 %v385, 0.25
    %v402 = vld [vmem:[%s4] sm:$0xff]
    %v403 = vld [vmem:[%s4 + $0x8] sm:$0xff]
    %v404 = vld [vmem:[%s4 + $0x10] sm:$0xff]
    %v405 = vld [vmem:[%s4 + $0x18] sm:$0xff]
    %v406 = vld [vmem:[%s4 + $0x20] sm:$0xff]
    %v407 = vld [vmem:[%s4 + $0x28] sm:$0xff]
    %v408 = vld [vmem:[%s4 + $0x30] sm:$0xff]
    %v409 = vld [vmem:[%s4 + $0x38] sm:$0xff]
    %v410 = vld [vmem:[%s4 + $0x40] sm:$0xff]
    %v411 = vld [vmem:[%s4 + $0x48] sm:$0xff]
    %v412 = vld [vmem:[%s4 + $0x50] sm:$0xff]
    %v413 = vld [vmem:[%s4 + $0x58] sm:$0xff]
    %v414 = vld [vmem:[%s4 + $0x60] sm:$0xff]
    %v415 = vld [vmem:[%s4 + $0x68] sm:$0xff]
    %v416 = vld [vmem:[%s4 + $0x70] sm:$0xff]
    %v417 = vld [vmem:[%s4 + $0x78] sm:$0xff]
    %v418 = vld [vmem:[%s5] sm:$0x1]
    %419 = vset.pattern.permute.xlu0 0
    %420 = vperm.xlu0 %419, %v402
    %v421 = vpop.permute.xlu0 %420
    %422 = vset.pattern.permute.xlu0 0
    %423 = vperm.xlu0 %422, %v403
    %v424 = vpop.permute.xlu0 %423
    %425 = vset.pattern.permute.xlu0 0
    %426 = vperm.xlu0 %425, %v404
    %v427 = vpop.permute.xlu0 %426
    %428 = vset.pattern.permute.xlu0 0
    %429 = vperm.xlu0 %428, %v405
    %v430 = vpop.permute.xlu0 %429
    %431 = vset.pattern.permute.xlu0 0
    %432 = vperm.xlu0 %431, %v406
    %v433 = vpop.permute.xlu0 %432
    %434 = vset.pattern.permute.xlu0 0
    %435 = vperm.xlu0 %434, %v407
    %v436 = vpop.permute.xlu0 %435
    %437 = vset.pattern.permute.xlu0 0
    %438 = vperm.xlu0 %437, %v408
    %v439 = vpop.permute.xlu0 %438
    %440 = vset.pattern.permute.xlu0 0
    %441 = vperm.xlu0 %440, %v409
    %v442 = vpop.permute.xlu0 %441
    %443 = vset.pattern.permute.xlu0 0
    %444 = vperm.xlu0 %443, %v410
    %v445 = vpop.permute.xlu0 %444
    %446 = vset.pattern.permute.xlu0 0
    %447 = vperm.xlu0 %446, %v411
    %v448 = vpop.permute.xlu0 %447
    %449 = vset.pattern.permute.xlu0 0
    %450 = vperm.xlu0 %449, %v412
    %v451 = vpop.permute.xlu0 %450
    %452 = vset.pattern.permute.xlu0 0
    %453 = vperm.xlu0 %452, %v413
    %v454 = vpop.permute.xlu0 %453
    %455 = vset.pattern.permute.xlu0 0
    %456 = vperm.xlu0 %455, %v414
    %v457 = vpop.permute.xlu0 %456
    %458 = vset.pattern.permute.xlu0 0
    %459 = vperm.xlu0 %458, %v415
    %v460 = vpop.permute.xlu0 %459
    %461 = vset.pattern.permute.xlu0 0
    %462 = vperm.xlu0 %461, %v416
    %v463 = vpop.permute.xlu0 %462
    %464 = vset.pattern.permute.xlu0 0
    %465 = vperm.xlu0 %464, %v417
    %v466 = vpop.permute.xlu0 %465
    %v467 = vlaneseq
    %v468 = vshrl.u32 %v467, 7
    %v469 = vsub.s32 0, %v468
    %v470 = vrot.slane %v418, %v469
    %vm471 = vcmp.eq.s32.totalorder %v421, %v470
    %vm472 = vcmp.eq.s32.totalorder %v424, %v470
    %vm473 = vcmp.eq.s32.totalorder %v427, %v470
    %vm474 = vcmp.eq.s32.totalorder %v430, %v470
    %vm475 = vcmp.eq.s32.totalorder %v433, %v470
    %vm476 = vcmp.eq.s32.totalorder %v436, %v470
    %vm477 = vcmp.eq.s32.totalorder %v439, %v470
    %vm478 = vcmp.eq.s32.totalorder %v442, %v470
    %vm479 = vcmp.eq.s32.totalorder %v445, %v470
    %vm480 = vcmp.eq.s32.totalorder %v448, %v470
    %vm481 = vcmp.eq.s32.totalorder %v451, %v470
    %vm482 = vcmp.eq.s32.totalorder %v454, %v470
    %vm483 = vcmp.eq.s32.totalorder %v457, %v470
    %vm484 = vcmp.eq.s32.totalorder %v460, %v470
    %vm485 = vcmp.eq.s32.totalorder %v463, %v470
    %vm486 = vcmp.eq.s32.totalorder %v466, %v470
    %vm487 = vcmp.ge.f32.partialorder %v386, 1.96
    %vm488 = vcmp.ge.f32.partialorder %v387, 1.96
    %vm489 = vcmp.ge.f32.partialorder %v388, 1.96
    %vm490 = vcmp.ge.f32.partialorder %v389, 1.96
    %vm491 = vcmp.ge.f32.partialorder %v390, 1.96
    %vm492 = vcmp.ge.f32.partialorder %v391, 1.96
    %vm493 = vcmp.ge.f32.partialorder %v392, 1.96
    %vm494 = vcmp.ge.f32.partialorder %v393, 1.96
    %vm495 = vcmp.ge.f32.partialorder %v394, 1.96
    %vm496 = vcmp.ge.f32.partialorder %v395, 1.96
    %vm497 = vcmp.ge.f32.partialorder %v396, 1.96
    %vm498 = vcmp.ge.f32.partialorder %v397, 1.96
    %vm499 = vcmp.ge.f32.partialorder %v398, 1.96
    %vm500 = vcmp.ge.f32.partialorder %v399, 1.96
    %vm501 = vcmp.ge.f32.partialorder %v400, 1.96
    %vm502 = vcmp.ge.f32.partialorder %v401, 1.96
    %vm503 = vmor %vm471, %vm487
    %vm504 = vmor %vm472, %vm488
    %vm505 = vmor %vm473, %vm489
    %vm506 = vmor %vm474, %vm490
    %vm507 = vmor %vm475, %vm491
    %vm508 = vmor %vm476, %vm492
    %vm509 = vmor %vm477, %vm493
    %vm510 = vmor %vm478, %vm494
    %vm511 = vmor %vm479, %vm495
    %vm512 = vmor %vm480, %vm496
    %vm513 = vmor %vm481, %vm497
    %vm514 = vmor %vm482, %vm498
    %vm515 = vmor %vm483, %vm499
    %vm516 = vmor %vm484, %vm500
    %vm517 = vmor %vm485, %vm501
    %vm518 = vmor %vm486, %vm502
    %v519 = vlaneseq
    %v520 = vand.u32 %v519, 127
    %vm521 = vcmp.ge.s32.totalorder %v520, 16
    %v522 = vsel %vm521, 1, 0
    %vm523 = vcmp.eq.s32.totalorder %v522, 1
    %vm524 = vmor %vm503, %vm523
    %vm525 = vmor %vm504, %vm523
    %vm526 = vmor %vm505, %vm523
    %vm527 = vmor %vm506, %vm523
    %vm528 = vmor %vm507, %vm523
    %vm529 = vmor %vm508, %vm523
    %vm530 = vmor %vm509, %vm523
    %vm531 = vmor %vm510, %vm523
    %vm532 = vmor %vm511, %vm523
    %vm533 = vmor %vm512, %vm523
    %vm534 = vmor %vm513, %vm523
    %vm535 = vmor %vm514, %vm523
    %vm536 = vmor %vm515, %vm523
    %vm537 = vmor %vm516, %vm523
    %vm538 = vmor %vm517, %vm523
    %vm539 = vmor %vm518, %vm523
    %v540 = vmul.f32 %v386, 0.25
    %v541 = vmul.f32 %v387, 0.25
    %v542 = vmul.f32 %v388, 0.25
    %v543 = vmul.f32 %v389, 0.25
    %v544 = vmul.f32 %v390, 0.25
    %v545 = vmul.f32 %v391, 0.25
    %v546 = vmul.f32 %v392, 0.25
    %v547 = vmul.f32 %v393, 0.25
    %v548 = vmul.f32 %v394, 0.25
    %v549 = vmul.f32 %v395, 0.25
    %v550 = vmul.f32 %v396, 0.25
    %v551 = vmul.f32 %v397, 0.25
    %v552 = vmul.f32 %v398, 0.25
    %v553 = vmul.f32 %v399, 0.25
    %v554 = vmul.f32 %v400, 0.25
    %v555 = vmul.f32 %v401, 0.25
    %v556 = vsub.f32 1.0, %v540
    %v557 = vsub.f32 1.0, %v541
    %v558 = vsub.f32 1.0, %v542
    %v559 = vsub.f32 1.0, %v543
    %v560 = vsub.f32 1.0, %v544
    %v561 = vsub.f32 1.0, %v545
    %v562 = vsub.f32 1.0, %v546
    %v563 = vsub.f32 1.0, %v547
    %v564 = vsub.f32 1.0, %v548
    %v565 = vsub.f32 1.0, %v549
    %v566 = vsub.f32 1.0, %v550
    %v567 = vsub.f32 1.0, %v551
    %v568 = vsub.f32 1.0, %v552
    %v569 = vsub.f32 1.0, %v553
    %v570 = vsub.f32 1.0, %v554
    %v571 = vsub.f32 1.0, %v555
    %v572 = vmax.f32 %v556, 1e-20
    %v573 = vmax.f32 %v557, 1e-20
    %v574 = vmax.f32 %v558, 1e-20
    %v575 = vmax.f32 %v559, 1e-20
    %v576 = vmax.f32 %v560, 1e-20
    %v577 = vmax.f32 %v561, 1e-20
    %v578 = vmax.f32 %v562, 1e-20
    %v579 = vmax.f32 %v563, 1e-20
    %v580 = vmax.f32 %v564, 1e-20
    %v581 = vmax.f32 %v565, 1e-20
    %v582 = vmax.f32 %v566, 1e-20
    %v583 = vmax.f32 %v567, 1e-20
    %v584 = vmax.f32 %v568, 1e-20
    %v585 = vmax.f32 %v569, 1e-20
    %v586 = vmax.f32 %v570, 1e-20
    %v587 = vmax.f32 %v571, 1e-20
    %v588 = vlog2.pop %v386
    %v589 = vmul.f32 %v588, 0.6931472
    %v590 = vlog2.pop %v387
    %v591 = vmul.f32 %v590, 0.6931472
    %v592 = vlog2.pop %v388
    %v593 = vmul.f32 %v592, 0.6931472
    %v594 = vlog2.pop %v389
    %v595 = vmul.f32 %v594, 0.6931472
    %v596 = vlog2.pop %v390
    %v597 = vmul.f32 %v596, 0.6931472
    %v598 = vlog2.pop %v391
    %v599 = vmul.f32 %v598, 0.6931472
    %v600 = vlog2.pop %v392
    %v601 = vmul.f32 %v600, 0.6931472
    %v602 = vlog2.pop %v393
    %v603 = vmul.f32 %v602, 0.6931472
    %v604 = vlog2.pop %v394
    %v605 = vmul.f32 %v604, 0.6931472
    %v606 = vlog2.pop %v395
    %v607 = vmul.f32 %v606, 0.6931472
    %v608 = vlog2.pop %v396
    %v609 = vmul.f32 %v608, 0.6931472
    %v610 = vlog2.pop %v397
    %v611 = vmul.f32 %v610, 0.6931472
    %v612 = vlog2.pop %v398
    %v613 = vmul.f32 %v612, 0.6931472
    %v614 = vlog2.pop %v399
    %v615 = vmul.f32 %v614, 0.6931472
    %v616 = vlog2.pop %v400
    %v617 = vmul.f32 %v616, 0.6931472
    %v618 = vlog2.pop %v401
    %v619 = vmul.f32 %v618, 0.6931472
    %v620 = vmul.f32 %v589, -15.0
    %v621 = vmul.f32 %v591, -15.0
    %v622 = vmul.f32 %v593, -15.0
    %v623 = vmul.f32 %v595, -15.0
    %v624 = vmul.f32 %v597, -15.0
    %v625 = vmul.f32 %v599, -15.0
    %v626 = vmul.f32 %v601, -15.0
    %v627 = vmul.f32 %v603, -15.0
    %v628 = vmul.f32 %v605, -15.0
    %v629 = vmul.f32 %v607, -15.0
    %v630 = vmul.f32 %v609, -15.0
    %v631 = vmul.f32 %v611, -15.0
    %v632 = vmul.f32 %v613, -15.0
    %v633 = vmul.f32 %v615, -15.0
    %v634 = vmul.f32 %v617, -15.0
    %v635 = vmul.f32 %v619, -15.0
    %v636 = vlog2.pop %v572
    %v637 = vmul.f32 %v636, 0.6931472
    %v638 = vlog2.pop %v573
    %v639 = vmul.f32 %v638, 0.6931472
    %v640 = vlog2.pop %v574
    %v641 = vmul.f32 %v640, 0.6931472
    %v642 = vlog2.pop %v575
    %v643 = vmul.f32 %v642, 0.6931472
    %v644 = vlog2.pop %v576
    %v645 = vmul.f32 %v644, 0.6931472
    %v646 = vlog2.pop %v577
    %v647 = vmul.f32 %v646, 0.6931472
    %v648 = vlog2.pop %v578
    %v649 = vmul.f32 %v648, 0.6931472
    %v650 = vlog2.pop %v579
    %v651 = vmul.f32 %v650, 0.6931472
    %v652 = vlog2.pop %v580
    %v653 = vmul.f32 %v652, 0.6931472
    %v654 = vlog2.pop %v581
    %v655 = vmul.f32 %v654, 0.6931472
    %v656 = vlog2.pop %v582
    %v657 = vmul.f32 %v656, 0.6931472
    %v658 = vlog2.pop %v583
    %v659 = vmul.f32 %v658, 0.6931472
    %v660 = vlog2.pop %v584
    %v661 = vmul.f32 %v660, 0.6931472
    %v662 = vlog2.pop %v585
    %v663 = vmul.f32 %v662, 0.6931472
    %v664 = vlog2.pop %v586
    %v665 = vmul.f32 %v664, 0.6931472
    %v666 = vlog2.pop %v587
    %v667 = vmul.f32 %v666, 0.6931472
    %v668 = vmul.f32 %v637, 14.5
    %v669 = vmul.f32 %v639, 14.5
    %v670 = vmul.f32 %v641, 14.5
    %v671 = vmul.f32 %v643, 14.5
    %v672 = vmul.f32 %v645, 14.5
    %v673 = vmul.f32 %v647, 14.5
    %v674 = vmul.f32 %v649, 14.5
    %v675 = vmul.f32 %v651, 14.5
    %v676 = vmul.f32 %v653, 14.5
    %v677 = vmul.f32 %v655, 14.5
    %v678 = vmul.f32 %v657, 14.5
    %v679 = vmul.f32 %v659, 14.5
    %v680 = vmul.f32 %v661, 14.5
    %v681 = vmul.f32 %v663, 14.5
    %v682 = vmul.f32 %v665, 14.5
    %v683 = vmul.f32 %v667, 14.5
    %v684 = vsub.f32 %v620, %v668
    %v685 = vsub.f32 %v621, %v669
    %v686 = vsub.f32 %v622, %v670
    %v687 = vsub.f32 %v623, %v671
    %v688 = vsub.f32 %v624, %v672
    %v689 = vsub.f32 %v625, %v673
    %v690 = vsub.f32 %v626, %v674
    %v691 = vsub.f32 %v627, %v675
    %v692 = vsub.f32 %v628, %v676
    %v693 = vsub.f32 %v629, %v677
    %v694 = vsub.f32 %v630, %v678
    %v695 = vsub.f32 %v631, %v679
    %v696 = vsub.f32 %v632, %v680
    %v697 = vsub.f32 %v633, %v681
    %v698 = vsub.f32 %v634, %v682
    %v699 = vsub.f32 %v635, %v683
    %v700 = vsel %vm524, 0.0, %v684
    %v701 = vsel %vm525, 0.0, %v685
    %v702 = vsel %vm526, 0.0, %v686
    %v703 = vsel %vm527, 0.0, %v687
    %v704 = vsel %vm528, 0.0, %v688
    %v705 = vsel %vm529, 0.0, %v689
    %v706 = vsel %vm530, 0.0, %v690
    %v707 = vsel %vm531, 0.0, %v691
    %v708 = vsel %vm532, 0.0, %v692
    %v709 = vsel %vm533, 0.0, %v693
    %v710 = vsel %vm534, 0.0, %v694
    %v711 = vsel %vm535, 0.0, %v695
    %v712 = vsel %vm536, 0.0, %v696
    %v713 = vsel %vm537, 0.0, %v697
    %v714 = vsel %vm538, 0.0, %v698
    %v715 = vsel %vm539, 0.0, %v699
    %716 = vmax.xlane.f32.xlu0 %v700
    %v717 = vpop.xlane.xlu0 %716
    %718 = vmax.xlane.f32.xlu0 %v701
    %v719 = vpop.xlane.xlu0 %718
    %720 = vmax.xlane.f32.xlu0 %v702
    %v721 = vpop.xlane.xlu0 %720
    %722 = vmax.xlane.f32.xlu0 %v703
    %v723 = vpop.xlane.xlu0 %722
    %724 = vmax.xlane.f32.xlu0 %v704
    %v725 = vpop.xlane.xlu0 %724
    %726 = vmax.xlane.f32.xlu0 %v705
    %v727 = vpop.xlane.xlu0 %726
    %728 = vmax.xlane.f32.xlu0 %v706
    %v729 = vpop.xlane.xlu0 %728
    %730 = vmax.xlane.f32.xlu0 %v707
    %v731 = vpop.xlane.xlu0 %730
    %732 = vmax.xlane.f32.xlu0 %v708
    %v733 = vpop.xlane.xlu0 %732
    %734 = vmax.xlane.f32.xlu0 %v709
    %v735 = vpop.xlane.xlu0 %734
    %736 = vmax.xlane.f32.xlu0 %v710
    %v737 = vpop.xlane.xlu0 %736
    %738 = vmax.xlane.f32.xlu0 %v711
    %v739 = vpop.xlane.xlu0 %738
    %740 = vmax.xlane.f32.xlu0 %v712
    %v741 = vpop.xlane.xlu0 %740
    %742 = vmax.xlane.f32.xlu0 %v713
    %v743 = vpop.xlane.xlu0 %742
    %744 = vmax.xlane.f32.xlu0 %v714
    %v745 = vpop.xlane.xlu0 %744
    %746 = vmax.xlane.f32.xlu0 %v715
    %v747 = vpop.xlane.xlu0 %746
    %v748 = vsub.f32 %v700, %v717
    %v749 = vsub.f32 %v701, %v719
    %v750 = vsub.f32 %v702, %v721
    %v751 = vsub.f32 %v703, %v723
    %v752 = vsub.f32 %v704, %v725
    %v753 = vsub.f32 %v705, %v727
    %v754 = vsub.f32 %v706, %v729
    %v755 = vsub.f32 %v707, %v731
    %v756 = vsub.f32 %v708, %v733
    %v757 = vsub.f32 %v709, %v735
    %v758 = vsub.f32 %v710, %v737
    %v759 = vsub.f32 %v711, %v739
    %v760 = vsub.f32 %v712, %v741
    %v761 = vsub.f32 %v713, %v743
    %v762 = vsub.f32 %v714, %v745
    %v763 = vsub.f32 %v715, %v747
    %v764 = vmul.f32 %v748, 1.442695
    %v765 = vpow.pop %v764
    %v766 = vmul.f32 %v749, 1.442695
    %v767 = vpow.pop %v766
    %v768 = vmul.f32 %v750, 1.442695
    %v769 = vpow.pop %v768
    %v770 = vmul.f32 %v751, 1.442695
    %v771 = vpow.pop %v770
    %v772 = vmul.f32 %v752, 1.442695
    %v773 = vpow.pop %v772
    %v774 = vmul.f32 %v753, 1.442695
    %v775 = vpow.pop %v774
    %v776 = vmul.f32 %v754, 1.442695
    %v777 = vpow.pop %v776
    %v778 = vmul.f32 %v755, 1.442695
    %v779 = vpow.pop %v778
    %v780 = vmul.f32 %v756, 1.442695
    %v781 = vpow.pop %v780
    %v782 = vmul.f32 %v757, 1.442695
    %v783 = vpow.pop %v782
    %v784 = vmul.f32 %v758, 1.442695
    %v785 = vpow.pop %v784
    %v786 = vmul.f32 %v759, 1.442695
    %v787 = vpow.pop %v786
    %v788 = vmul.f32 %v760, 1.442695
    %v789 = vpow.pop %v788
    %v790 = vmul.f32 %v761, 1.442695
    %v791 = vpow.pop %v790
    %v792 = vmul.f32 %v762, 1.442695
    %v793 = vpow.pop %v792
    %v794 = vmul.f32 %v763, 1.442695
    %v795 = vpow.pop %v794
    %v796 = vadd.f32 %v765, 1e-09
    %v797 = vadd.f32 %v767, 1e-09
    %v798 = vadd.f32 %v769, 1e-09
    %v799 = vadd.f32 %v771, 1e-09
    %v800 = vadd.f32 %v773, 1e-09
    %v801 = vadd.f32 %v775, 1e-09
    %v802 = vadd.f32 %v777, 1e-09
    %v803 = vadd.f32 %v779, 1e-09
    %v804 = vadd.f32 %v781, 1e-09
    %v805 = vadd.f32 %v783, 1e-09
    %v806 = vadd.f32 %v785, 1e-09
    %v807 = vadd.f32 %v787, 1e-09
    %v808 = vadd.f32 %v789, 1e-09
    %v809 = vadd.f32 %v791, 1e-09
    %v810 = vadd.f32 %v793, 1e-09
    %v811 = vadd.f32 %v795, 1e-09
    %v812 = vsel %vm471, 0.0, %v796
    %v813 = vsel %vm472, 0.0, %v797
    %v814 = vsel %vm473, 0.0, %v798
    %v815 = vsel %vm474, 0.0, %v799
    %v816 = vsel %vm475, 0.0, %v800
    %v817 = vsel %vm476, 0.0, %v801
    %v818 = vsel %vm477, 0.0, %v802
    %v819 = vsel %vm478, 0.0, %v803
    %v820 = vsel %vm479, 0.0, %v804
    %v821 = vsel %vm480, 0.0, %v805
    %v822 = vsel %vm481, 0.0, %v806
    %v823 = vsel %vm482, 0.0, %v807
    %v824 = vsel %vm483, 0.0, %v808
    %v825 = vsel %vm484, 0.0, %v809
    %v826 = vsel %vm485, 0.0, %v810
    %v827 = vsel %vm486, 0.0, %v811
    %vm828 = vcmp.gt.f32.partialorder %v386, 1.96
    %vm829 = vcmp.gt.f32.partialorder %v387, 1.96
    %vm830 = vcmp.gt.f32.partialorder %v388, 1.96
    %vm831 = vcmp.gt.f32.partialorder %v389, 1.96
    %vm832 = vcmp.gt.f32.partialorder %v390, 1.96
    %vm833 = vcmp.gt.f32.partialorder %v391, 1.96
    %vm834 = vcmp.gt.f32.partialorder %v392, 1.96
    %vm835 = vcmp.gt.f32.partialorder %v393, 1.96
    %vm836 = vcmp.gt.f32.partialorder %v394, 1.96
    %vm837 = vcmp.gt.f32.partialorder %v395, 1.96
    %vm838 = vcmp.gt.f32.partialorder %v396, 1.96
    %vm839 = vcmp.gt.f32.partialorder %v397, 1.96
    %vm840 = vcmp.gt.f32.partialorder %v398, 1.96
    %vm841 = vcmp.gt.f32.partialorder %v399, 1.96
    %vm842 = vcmp.gt.f32.partialorder %v400, 1.96
    %vm843 = vcmp.gt.f32.partialorder %v401, 1.96
    %v844 = vsel %vm828, 1e-06, %v812
    %v845 = vsel %vm829, 1e-06, %v813
    %v846 = vsel %vm830, 1e-06, %v814
    %v847 = vsel %vm831, 1e-06, %v815
    %v848 = vsel %vm832, 1e-06, %v816
    %v849 = vsel %vm833, 1e-06, %v817
    %v850 = vsel %vm834, 1e-06, %v818
    %v851 = vsel %vm835, 1e-06, %v819
    %v852 = vsel %vm836, 1e-06, %v820
    %v853 = vsel %vm837, 1e-06, %v821
    %v854 = vsel %vm838, 1e-06, %v822
    %v855 = vsel %vm839, 1e-06, %v823
    %v856 = vsel %vm840, 1e-06, %v824
    %v857 = vsel %vm841, 1e-06, %v825
    %v858 = vsel %vm842, 1e-06, %v826
    %v859 = vsel %vm843, 1e-06, %v827
    %v860 = vpack.c.bf16 %v845, %v844
    %v861 = vpack.c.bf16 %v847, %v846
    %v862 = vpack.c.bf16 %v849, %v848
    %v863 = vpack.c.bf16 %v851, %v850
    %v864 = vpack.c.bf16 %v853, %v852
    %v865 = vpack.c.bf16 %v855, %v854
    %v866 = vpack.c.bf16 %v857, %v856
    %v867 = vpack.c.bf16 %v859, %v858
    %v876 = vunpack.c.l.b16 %v860
    %v877 = vunpack.c.h.b16 %v860
    %v878 = vunpack.c.l.b16 %v861
    %v879 = vunpack.c.h.b16 %v861
    %v880 = vunpack.c.l.b16 %v862
    %v881 = vunpack.c.h.b16 %v862
    %v882 = vunpack.c.l.b16 %v863
    %v883 = vunpack.c.h.b16 %v863
    %v884 = vunpack.c.l.b16 %v864
    %v885 = vunpack.c.h.b16 %v864
    %v886 = vunpack.c.l.b16 %v865
    %v887 = vunpack.c.h.b16 %v865
    %v888 = vunpack.c.l.b16 %v866
    %v889 = vunpack.c.h.b16 %v866
    %v890 = vunpack.c.l.b16 %v867
    %v891 = vunpack.c.h.b16 %v867
    %v892 = vpack.c.b16 %v876, %v876
    %v893 = vpack.c.b16 %v877, %v877
    %v894 = vpack.c.b16 %v878, %v878
    %v895 = vpack.c.b16 %v879, %v879
    %v896 = vpack.c.b16 %v880, %v880
    %v897 = vpack.c.b16 %v881, %v881
    %v898 = vpack.c.b16 %v882, %v882
    %v899 = vpack.c.b16 %v883, %v883
    %v900 = vpack.c.b16 %v884, %v884
    %v901 = vpack.c.b16 %v885, %v885
    %v902 = vpack.c.b16 %v886, %v886
    %v903 = vpack.c.b16 %v887, %v887
    %v904 = vpack.c.b16 %v888, %v888
    %v905 = vpack.c.b16 %v889, %v889
    %v906 = vpack.c.b16 %v890, %v890
    %v907 = vpack.c.b16 %v891, %v891
    %924 = vst [vmem:[#allocation2] sm:$0xf] %v892
    %925 = vst [vmem:[#allocation2 + $0x4] sm:$0xf] %v893
    %926 = vst [vmem:[#allocation2 + $0x8] sm:$0xf] %v894
    %927 = vst [vmem:[#allocation2 + $0xc] sm:$0xf] %v895
    %928 = vst [vmem:[#allocation2 + $0x10] sm:$0xf] %v896
    %929 = vst [vmem:[#allocation2 + $0x14] sm:$0xf] %v897
    %930 = vst [vmem:[#allocation2 + $0x18] sm:$0xf] %v898
    %931 = vst [vmem:[#allocation2 + $0x1c] sm:$0xf] %v899
    %932 = vst [vmem:[#allocation2 + $0x20] sm:$0xf] %v900
    %933 = vst [vmem:[#allocation2 + $0x24] sm:$0xf] %v901
    %934 = vst [vmem:[#allocation2 + $0x28] sm:$0xf] %v902
    %935 = vst [vmem:[#allocation2 + $0x2c] sm:$0xf] %v903
    %936 = vst [vmem:[#allocation2 + $0x30] sm:$0xf] %v904
    %937 = vst [vmem:[#allocation2 + $0x34] sm:$0xf] %v905
    %938 = vst [vmem:[#allocation2 + $0x38] sm:$0xf] %v906
    %939 = vst [vmem:[#allocation2 + $0x3c] sm:$0xf] %v907
    // Predicated region
    $region26: #{tpu_custom_call.1} parent=1 // pred_check
      _
    $region27: #{tpu_custom_call.1} parent=1 // pred_check_branch
      %941 = sbr.rel (0) target = $region29
    $region28: #{tpu_custom_call.1} parent=1 // pred_region
      %s943 = ssub.s32 1024, 1024
      %944 = vsyncadd [#allocation3], %s943
      %s945 = sshll.u32 [#allocation2], 4
      %s946 = int_to_ptr.vmem [resolvable:$true] %s945
      %951 = dma.vmem_to_hbm [thread:$0]  %s946, 1024, %s6, [#allocation3], 64, 64, 4
    $region29: #{tpu_custom_call.1} parent=1 // pred_fallthru
      _
    // Predicated region
    $region30: #{tpu_custom_call.1} parent=1 // pred_check
      _
    $region31: #{tpu_custom_call.1} parent=1 // pred_check_branch
      %953 = sbr.rel (0) target = $region33
    $region32: #{tpu_custom_call.1} parent=1 // pred_region
      %954 = dma.done [#allocation3], 1024
    $region33: #{tpu_custom_call.1} parent=1 // pred_fallthru
      _
    %955 = vsyncpa [#allocation3], 1

</llo_original>
